<compile_context>
chip_gen: v7x
topology: tpu7x:2x2x1
jax: 0.10.0
libtpu: 0.0.40
codegen_flags: <defaults>
</compile_context>

<pallas_src>
import math
import functools

import jax
import jax.numpy as jnp
from jax import lax
from jax.experimental import pallas as pl
from jax.experimental.pallas import tpu as pltpu


def _mix32(x):
    """lowbias32-style 32-bit integer mixer (good avalanche, cheap VPU ops)."""
    x = x ^ (x >> 16)
    x = x * jnp.uint32(0x7FEB352D)
    x = x ^ (x >> 15)
    x = x * jnp.uint32(0x846CA68B)
    x = x ^ (x >> 16)
    return x


def _pe_kernel(seed_ref, x_ref, pe_ref, o_ref, *, p, training):
    """Add positional encoding, then (optionally) apply inverted dropout."""
    x = x_ref[...]                                   # (tS, B, D)
    y = x + pe_ref[...].astype(x.dtype)              # broadcast (tS, 1, D) over batch

    if training and p >= 1.0:
        y = jnp.zeros_like(y)
    elif training and p > 0.0:
        tS, B, D = x_ref.shape
        # Global element index -> counter-based random bits (unique per tile/core).
        base = (pl.program_id(0) * tS).astype(jnp.uint32)
        row = lax.broadcasted_iota(jnp.uint32, (tS, B, D), 0)
        col = lax.broadcasted_iota(jnp.uint32, (tS, B, D), 1)
        dep = lax.broadcasted_iota(jnp.uint32, (tS, B, D), 2)
        gidx = (base + row) * jnp.uint32(B * D) + col * jnp.uint32(D) + dep
        seed = seed_ref[0].astype(jnp.uint32)
        bits = _mix32(gidx + seed * jnp.uint32(0x9E3779B9))
        # keep element iff uniform32 >= p * 2^32  (drop with probability p)
        threshold = jnp.uint32(min(int(p * 4294967296.0), 4294967295))
        keep = bits >= threshold
        scale = jnp.asarray(1.0 / (1.0 - p), dtype=y.dtype)
        y = jnp.where(keep, y * scale, jnp.zeros_like(y))

    o_ref[...] = y.astype(o_ref.dtype)


def make_positional_encoding_pe(d_model: int, max_len: int = 5000) -> jnp.ndarray:
    """Deterministic pe buffer, same formula as the PyTorch __init__."""
    position = jnp.arange(max_len, dtype=jnp.float32)[:, None]                  # (max_len, 1)
    div_term = jnp.exp(jnp.arange(0, d_model, 2, dtype=jnp.float32)
                       * (-math.log(10000.0) / d_model))                        # (d_model/2,)
    pe = jnp.zeros((max_len, 1, d_model), dtype=jnp.float32)
    pe = pe.at[:, 0, 0::2].set(jnp.sin(position * div_term))
    pe = pe.at[:, 0, 1::2].set(jnp.cos(position * div_term))
    return pe


def _pick_block_s(S: int, B: int, D: int, itemsize: int,
                  budget_bytes: int = 8 * 1024 * 1024) -> int:
    """Largest S-tile such that double-buffered x/out/pe tiles fit a
    conservative VMEM budget that works on v5e/v6e/v7x default scoped limits."""
    per_row = (4 * B * D + 2 * D) * itemsize          # 2x in + 2x out + 2x pe
    t = max(1, budget_bytes // per_row)
    t = min(t, S)
    if t >= 8:
        t = (t // 8) * 8                              # sublane-friendly
    return t


def positional_encoding(x, pe, *, p: float = 0.1, training: bool = False,
                        seed: int = 0, block_s: int | None = None):
    """
    x : (seq_len, batch, d_model)
    pe: (max_len, 1, d_model)   (full buffer; only the first seq_len rows are DMA'd)
    Returns dropout(x + pe[:seq_len]) with inverted dropout when training=True,
    identity dropout (eval mode) otherwise.
    """
    S, B, D = x.shape
    if block_s is None:
        block_s = _pick_block_s(S, B, D, jnp.dtype(x.dtype).itemsize)
    grid = (pl.cdiv(S, block_s),)
    seed_arr = jnp.array([seed], dtype=jnp.int32)

    kernel = functools.partial(_pe_kernel, p=float(p), training=bool(training))

    return pl.pallas_call(
        kernel,
        out_shape=jax.ShapeDtypeStruct((S, B, D), x.dtype),
        grid_spec=pltpu.PrefetchScalarGridSpec(
            num_scalar_prefetch=1,                    # seed lands in SMEM
            grid=grid,
            in_specs=[
                pl.BlockSpec((block_s, B, D), lambda i, seed: (i, 0, 0)),
                pl.BlockSpec((block_s, 1, D), lambda i, seed: (i, 0, 0)),
            ],
            out_specs=pl.BlockSpec((block_s, B, D), lambda i, seed: (i, 0, 0)),
        ),
        compiler_params=pltpu.CompilerParams(
            dimension_semantics=("parallel",)),
    )(seed_arr, x, pe)


if __name__ == "__main__":
    S, B, D = 8, 2, 32          # seq_len, batch_size, embedding_dim
    MAX_LEN = 64                # small max_len for the synthetic test
    P_DROP = 0.1

    key = jax.random.PRNGKey(0)
    x = jax.random.normal(key, (S, B, D), dtype=jnp.float32)

    pe = make_positional_encoding_pe(D, MAX_LEN)

    # Eval-mode forward (dropout = identity): check exactly against x + pe[:S]
    y_eval = positional_encoding(x, pe, p=P_DROP, training=False)
    jax.block_until_ready(y_eval)
    ref = x + pe[:S]
    assert jnp.allclose(y_eval, ref, atol=1e-6), "eval-mode mismatch vs reference"

    # Train-mode forward (in-kernel inverted dropout via counter-based hash).
    y_train = positional_encoding(x, pe, p=P_DROP, training=True, seed=123)
    jax.block_until_ready(y_train)
    kept = y_train != 0.0
    # Surviving elements are exactly scaled reference values.
    assert jnp.allclose(jnp.where(kept, y_train, 0.0),
                        jnp.where(kept, ref / (1.0 - P_DROP), 0.0), atol=1e-5)
    # Dropout actually fired, but did not drop everything.
    n_drop = int(jnp.sum(~kept))
    assert 0 < n_drop < y_train.size

    print("KERNEL_OK")
</pallas_src>

<mosaic_0001>
module attributes {stable_mosaic.version = 11 : i64} {
  func.func @_pe_kernel(%arg0: i32, %arg1: memref<1xi32, #tpu.memory_space<smem>>, %arg2: memref<8x2x32xf32, #tpu.memory_space<vmem>>, %arg3: memref<8x1x32xf32, #tpu.memory_space<vmem>>, %arg4: memref<8x2x32xf32, #tpu.memory_space<vmem>>) attributes {dimension_semantics = [#tpu.dimension_semantics<parallel>], iteration_bounds = array<i64: 1>, scalar_prefetch = 1 : i64, scratch_operands = 0 : i64, tpu.core_type = #tpu.core_type<tc>, window_params = [{transform_indices = @transform_0, window_bounds = array<i64: 8, 2, 32>}, {transform_indices = @transform_1, window_bounds = array<i64: 8, 1, 32>}, {transform_indices = @transform_2, window_bounds = array<i64: 8, 2, 32>}]} {
    %c0 = arith.constant 0 : index
    %c0_0 = arith.constant 0 : index
    %c0_1 = arith.constant 0 : index
    %0 = vector.load %arg2[%c0, %c0_0, %c0_1] : memref<8x2x32xf32, #tpu.memory_space<vmem>>, vector<8x2x32xf32>
    %c0_2 = arith.constant 0 : index
    %c0_3 = arith.constant 0 : index
    %c0_4 = arith.constant 0 : index
    %1 = vector.load %arg3[%c0_2, %c0_3, %c0_4] : memref<8x1x32xf32, #tpu.memory_space<vmem>>, vector<8x1x32xf32>
    %2 = vector.broadcast %1 : vector<8x1x32xf32> to vector<8x2x32xf32>
    %3 = arith.addf %0, %2 : vector<8x2x32xf32>
    %c0_5 = arith.constant 0 : index
    %c0_6 = arith.constant 0 : index
    %c0_7 = arith.constant 0 : index
    %4 = vector.load %arg4[%c0_5, %c0_6, %c0_7] : memref<8x2x32xf32, #tpu.memory_space<vmem>>, vector<8x2x32xf32>
    tpu.vector_store %arg4[%c0_5, %c0_6, %c0_7], %3 {strides = array<i32>} : memref<8x2x32xf32, #tpu.memory_space<vmem>>, vector<8x2x32xf32>,
    return
  }
  func.func @transform_0(%arg0: i32, %arg1: memref<1xi32, #tpu.memory_space<smem>>) -> (i32, i32, i32) {
    %c0_i32 = arith.constant 0 : i32
    %c0_i32_0 = arith.constant 0 : i32
    %c0_i32_1 = arith.constant 0 : i32
    return %arg0, %c0_i32, %c0_i32_0 : i32, i32, i32
  }
  func.func @transform_1(%arg0: i32, %arg1: memref<1xi32, #tpu.memory_space<smem>>) -> (i32, i32, i32) {
    %c0_i32 = arith.constant 0 : i32
    %c0_i32_0 = arith.constant 0 : i32
    %c0_i32_1 = arith.constant 0 : i32
    return %arg0, %c0_i32, %c0_i32_0 : i32, i32, i32
  }
  func.func @transform_2(%arg0: i32, %arg1: memref<1xi32, #tpu.memory_space<smem>>) -> (i32, i32, i32) {
    %c0_i32 = arith.constant 0 : i32
    %c0_i32_0 = arith.constant 0 : i32
    %c0_i32_1 = arith.constant 0 : i32
    return %arg0, %c0_i32, %c0_i32_0 : i32, i32, i32
  }
}

</mosaic_0001>

<llo_original>
// kernel: tpu_custom_call.1
$region0: #{tpu_custom_call.1}
  #allocation0 [shape = 'u32[]', space=smem, size = 0x4, offset = 0x4, fixed_abs, tag = 'smem constant byte address 0x4 - core index']
  #allocation1 [shape = 'u32[144,128]{1,0:T(1,128)}', space=vmem, size = 0x12000, scoped, tag = 'internal scratch']
  #allocation2 [shape = 's32[1]{0}', space=sflag, size = 0x4, scoped, tag = 'scoped memory for tpu_custom_call.1']
  #allocation3 [shape = 's32[1]{0:T(128)S(6)}', space=smem, size = 0x200, scoped, tag = 'prefetched SMEM operand 0']
  %s0 = inlined_call_operand.<no memory space> [shape: s32[1], index: 0, kind: input, shape index: {}]
  %s1 = inlined_call_operand.vmem [shape: f32[8,2,32], index: 1, kind: input, shape index: {}]
  %s2 = inlined_call_operand.vmem [shape: f32[64,1,32], index: 2, kind: input, shape index: {}]
  %s3 = inlined_call_operand.hbm [shape: f32[8,2,32], index: 3, kind: output, shape index: {}]
  %s4 = sld [smem:[#allocation0]]
  $region18: #{tpu_custom_call.1} parent=0
    _
  %s6 = ssub.s32 1, %s4
  %s7 = scalar_select 0, %s6, %s4
  %8 = sst [smem:[#allocation3]] %s0
  $region1: #{tpu_custom_call.1} parent=0
    #allocation4 [shape = 'u8[8192]{0}', space=vmem, size = 0x2000, scoped, tag = 'output window, operand 0, single buffered']
    #allocation5 [shape = 's32[1]{0}', space=sflag, size = 0x4, scoped, tag = 'scoped memory for tpu_custom_call.1']
    %9 = vsyncpa [#allocation5], 0
    // Predicated region
    $region2: #{tpu_custom_call.1} parent=1 // pred_check
      _
    $region3: #{tpu_custom_call.1} parent=1 // pred_check_branch
      %11 = sbr.rel (0) target = $region5
    $region4: #{tpu_custom_call.1} parent=1 // pred_region
      _
    $region5: #{tpu_custom_call.1} parent=1 // pred_fallthru
      _
    // Predicated region
    $region6: #{tpu_custom_call.1} parent=1 // pred_check
      _
    $region7: #{tpu_custom_call.1} parent=1 // pred_check_branch
      %13 = sbr.rel (0) target = $region9
    $region8: #{tpu_custom_call.1} parent=1 // pred_region
      _
    $region9: #{tpu_custom_call.1} parent=1 // pred_fallthru
      _
    %v14 = vld [vmem:[%s1] sm:$0x3]
    %v15 = vld [vmem:[%s1 + $0x2] sm:$0x3]
    %v16 = vld [vmem:[%s1 + $0x4] sm:$0x3]
    %v17 = vld [vmem:[%s1 + $0x6] sm:$0x3]
    %v18 = vld [vmem:[%s1 + $0x8] sm:$0x3]
    %v19 = vld [vmem:[%s1 + $0xa] sm:$0x3]
    %v20 = vld [vmem:[%s1 + $0xc] sm:$0x3]
    %v21 = vld [vmem:[%s1 + $0xe] sm:$0x3]
    %v22 = vld [vmem:[%s2] sm:$0x1]
    %v23 = vld [vmem:[%s2 + $0x1] sm:$0x1]
    %v24 = vld [vmem:[%s2 + $0x2] sm:$0x1]
    %v25 = vld [vmem:[%s2 + $0x3] sm:$0x1]
    %v26 = vld [vmem:[%s2 + $0x4] sm:$0x1]
    %v27 = vld [vmem:[%s2 + $0x5] sm:$0x1]
    %v28 = vld [vmem:[%s2 + $0x6] sm:$0x1]
    %v29 = vld [vmem:[%s2 + $0x7] sm:$0x1]
    %v38 = vlaneseq
    %v39 = vshrl.u32 %v38, 7
    %v40 = vsub.s32 0, %v39
    %v41 = vrot.slane %v22, %v40
    %v42 = vlaneseq
    %v43 = vshrl.u32 %v42, 7
    %v44 = vsub.s32 0, %v43
    %v45 = vrot.slane %v23, %v44
    %v46 = vlaneseq
    %v47 = vshrl.u32 %v46, 7
    %v48 = vsub.s32 0, %v47
    %v49 = vrot.slane %v24, %v48
    %v50 = vlaneseq
    %v51 = vshrl.u32 %v50, 7
    %v52 = vsub.s32 0, %v51
    %v53 = vrot.slane %v25, %v52
    %v54 = vlaneseq
    %v55 = vshrl.u32 %v54, 7
    %v56 = vsub.s32 0, %v55
    %v57 = vrot.slane %v26, %v56
    %v58 = vlaneseq
    %v59 = vshrl.u32 %v58, 7
    %v60 = vsub.s32 0, %v59
    %v61 = vrot.slane %v27, %v60
    %v62 = vlaneseq
    %v63 = vshrl.u32 %v62, 7
    %v64 = vsub.s32 0, %v63
    %v65 = vrot.slane %v28, %v64
    %v66 = vlaneseq
    %v67 = vshrl.u32 %v66, 7
    %v68 = vsub.s32 0, %v67
    %v69 = vrot.slane %v29, %v68
    %v78 = vadd.f32 %v14, %v41
    %v79 = vadd.f32 %v15, %v45
    %v80 = vadd.f32 %v16, %v49
    %v81 = vadd.f32 %v17, %v53
    %v82 = vadd.f32 %v18, %v57
    %v83 = vadd.f32 %v19, %v61
    %v84 = vadd.f32 %v20, %v65
    %v85 = vadd.f32 %v21, %v69
    %vm86 = vcmask 254976
    %87 = vst.msk [vmem:[#allocation4] sm:$0x3] %vm86, %v78
    %88 = vst.msk [vmem:[#allocation4 + $0x2] sm:$0x3] %vm86, %v79
    %89 = vst.msk [vmem:[#allocation4 + $0x4] sm:$0x3] %vm86, %v80
    %90 = vst.msk [vmem:[#allocation4 + $0x6] sm:$0x3] %vm86, %v81
    %91 = vst.msk [vmem:[#allocation4 + $0x8] sm:$0x3] %vm86, %v82
    %92 = vst.msk [vmem:[#allocation4 + $0xa] sm:$0x3] %vm86, %v83
    %93 = vst.msk [vmem:[#allocation4 + $0xc] sm:$0x3] %vm86, %v84
    %94 = vst.msk [vmem:[#allocation4 + $0xe] sm:$0x3] %vm86, %v85
    // Predicated region
    $region10: #{tpu_custom_call.1} parent=1 // pred_check
      _
    $region11: #{tpu_custom_call.1} parent=1 // pred_check_branch
      %96 = sbr.rel (0) target = $region13
    $region12: #{tpu_custom_call.1} parent=1 // pred_region
      %s98 = ssub.s32 256, 256
      %99 = vsyncadd [#allocation5], %s98
      %s100 = sshll.u32 [#allocation4], 4
      %s101 = int_to_ptr.vmem [resolvable:$true] %s100
      %106 = dma.vmem_to_hbm [thread:$0]  %s101, 256, %s3, [#allocation5], 32, 32, 2
    $region13: #{tpu_custom_call.1} parent=1 // pred_fallthru
      _
    // Predicated region
    $region14: #{tpu_custom_call.1} parent=1 // pred_check
      _
    $region15: #{tpu_custom_call.1} parent=1 // pred_check_branch
      %108 = sbr.rel (0) target = $region17
    $region16: #{tpu_custom_call.1} parent=1 // pred_region
      %109 = dma.done [#allocation5], 256
    $region17: #{tpu_custom_call.1} parent=1 // pred_fallthru
      _
    %110 = vsyncpa [#allocation5], 1

</llo_original>
